<compile_context>
chip_gen: v6e
topology: v6e:2x2x1
jax: 0.10.0
libtpu: 0.0.40
codegen_flags: <defaults>
</compile_context>

<pallas_src>
import functools

import jax
import jax.numpy as jnp
import numpy as np
from jax.experimental import pallas as pl
from jax.experimental.pallas import tpu as pltpu

EPS = 1e-8


# --------------------------------------------------------------------------- #
# Kernel
# --------------------------------------------------------------------------- #
def _dain_kernel(*refs, mode, feat, group):
    """Fused DAIN forward on one (Bb, rows, lanes) block.

    Lane layout: `group` consecutive timesteps are folded into one `lanes`-wide
    row (lane j holds feature j % feat), so rows * group == T and every store
    is lane-dense.  group == 1 is the plain (Bb, T, D) layout.

    refs (in-refs then out-ref) by mode:
      'avg'            : (x, o)
      'adaptive_avg'   : (x, wm, o)
      'adaptive_scale' : (x, wm, ws, o)
      'full'           : (x, wm, ws, wg, bg, o)
    Weights are pre-transposed (and block-replicated / scaled for group > 1) in
    the wrapper so each matmul is a replicated-lane `stats @ W`.
    """
    x_ref, o_ref = refs[0], refs[-1]
    x = x_ref[...].astype(jnp.float32)                      # (Bb, rows, lanes)
    inv_t = 1.0 / (x.shape[1] * group)

    def mean_over_t(v):
        # Sublane reduction over `rows`, then log2(group) XLU lane rotations so
        # every lane holds the full per-feature sum (replicated across the
        # `group` lane-groups).  group == 1 -> plain reduction.
        row = jnp.sum(v, axis=1)                            # (Bb, lanes)
        shift, g = feat, group
        while g > 1:
            row = row + pltpu.roll(row, shift=shift, axis=1)
            shift *= 2
            g //= 2
        return row * inv_t

    avg = mean_over_t(x)                                    # (Bb, lanes)

    if mode == "avg":
        sub = avg
    else:
        sub = jnp.dot(avg, refs[1][...], preferred_element_type=jnp.float32)

    xm = x - sub[:, None, :]                                # reused by output pass

    if mode in ("avg", "adaptive_avg"):
        o_ref[...] = xm.astype(o_ref.dtype)
        return

    # Exact two-pass variance E[(x - a)^2]: matches the reference numerics and
    # avoids the catastrophic cancellation of E[x^2] - 2aE[x] + a^2.
    std = jnp.sqrt(mean_over_t(xm * xm) + EPS)
    astd = jnp.dot(std, refs[2][...], preferred_element_type=jnp.float32)
    astd = jnp.where(astd <= EPS, 1.0, astd)                # adaptive_std[<=eps] = 1
    inv_std = pl.reciprocal(astd, approx=False)             # row-level reciprocal

    if mode == "adaptive_scale":
        mul = inv_std
    else:  # 'full'
        # mean over T of (x - a) * inv_std  ==  (E[x] - a) * inv_std
        avg2 = (avg - sub) * inv_std
        gate = jax.nn.sigmoid(
            jnp.dot(avg2, refs[3][...], preferred_element_type=jnp.float32)
            + refs[4][...])
        mul = inv_std * gate

    o_ref[...] = (xm * mul[:, None, :]).astype(o_ref.dtype)


# --------------------------------------------------------------------------- #
# Planning helpers
# --------------------------------------------------------------------------- #
def _tpu_generation_info():
    """(usable VMEM budget, TensorCore count) with conservative fallbacks."""
    vmem_cap = 64 << 20          # smallest current generation (v7x per-TC)
    num_cores = 2                # assume megacore; costs <=1 tiny extra step otherwise
    try:
        info = pltpu.get_tpu_info()
        vmem_cap = int(getattr(info, "vmem_capacity_bytes", vmem_cap))
        for attr in ("num_tensorcores", "tensorcore_count", "num_cores",
                     "core_count"):
            v = getattr(info, attr, None)
            if isinstance(v, int) and v > 0:
                num_cores = v
                break
    except Exception:
        pass
    num_cores = max(1, min(int(num_cores), 4))
    # Never declare the full physical VMEM (compiler scratch / semaphores need
    # headroom): ~48 MiB on v7x (64 MiB), ~96 MiB on v5e/v6e (128 MiB).
    vmem_budget = min(vmem_cap * 3 // 4, 100 << 20)
    return int(vmem_budget), num_cores


def _plan_batch_tiling(B, rows, lanes, itemsize, *, num_cores, vmem_budget):
    """Per-step batch tile Bb, grid step count, and batch padding."""
    # Per-sample VMEM: double-buffered in + out DMA blocks plus ~3 fp32
    # temporaries (x cast, xm, output expression).
    per_sample = rows * lanes * (4 * itemsize + 3 * 4)
    data_budget = max(vmem_budget - (8 << 20), 8 << 20)     # weights + margin
    cap = max(1, data_budget // max(per_sample, 1))
    # Mem-bound roofline saturates around 1-4 MiB blocks; cap x block ~6 MiB.
    cap = min(cap, max(1, (6 << 20) // max(rows * lanes * itemsize, 1)))
    cap = max(1, min(cap, 512, B))

    if num_cores >= 2 and B > 1:
        steps = max(num_cores, pl.cdiv(B, cap))
        steps = pl.cdiv(steps, num_cores) * num_cores       # even megacore split
    else:
        steps = pl.cdiv(B, cap)                             # 1 step allowed on 1 TC
    bb = pl.cdiv(B, steps)
    b_pad = steps * bb - B
    return bb, steps, b_pad


# --------------------------------------------------------------------------- #
# pallas_call wrapper
# --------------------------------------------------------------------------- #
def _dain_pallas_call(x_k, weights, mode, bb, steps, *, feat, group, vmem_budget):
    Bp, rows, lanes = x_k.shape
    assert Bp == bb * steps

    x_spec = pl.BlockSpec((bb, rows, lanes), lambda b: (b, 0, 0))
    out_spec = pl.BlockSpec((bb, rows, lanes), lambda b: (b, 0, 0))
    # Grid-invariant weight blocks (constant index_map): not re-fetched between
    # consecutive steps, so no explicit single-buffering is needed.
    w_specs = [pl.BlockSpec(tuple(w.shape), lambda b: (0, 0)) for w in weights]

    itemsize = x_k.dtype.itemsize
    bytes_block = bb * rows * lanes * itemsize               # one DMA block
    bytes_temps = 3 * bb * rows * lanes * 4                  # fp32 x, xm, out expr
    bytes_w = sum(int(np.prod(w.shape)) * w.dtype.itemsize for w in weights)
    vmem_limit = 4 * bytes_block + bytes_temps + 2 * bytes_w + (4 << 20)
    vmem_limit = int(min(max(vmem_limit, 16 << 20), vmem_budget))

    kernel = functools.partial(_dain_kernel, mode=mode, feat=feat, group=group)
    return pl.pallas_call(
        kernel,
        out_shape=jax.ShapeDtypeStruct(x_k.shape, x_k.dtype),
        grid_spec=pltpu.PrefetchScalarGridSpec(
            num_scalar_prefetch=0,
            grid=(steps,),
            in_specs=[x_spec] + w_specs,
            out_specs=out_spec,
        ),
        compiler_params=pltpu.CompilerParams(
            dimension_semantics=("parallel",),
            vmem_limit_bytes=vmem_limit,
        ),
    )(x_k, *weights)


def dain_forward(x, params, mode="adaptive_avg"):
    """DAIN forward. x: (B, T, D). params: dict of PyTorch-style (out, in) weights."""
    if mode is None:                 # PyTorch: `pass` -> identity
        return x
    assert mode in ("avg", "adaptive_avg", "adaptive_scale", "full")
    B, T, D = x.shape

    vmem_budget, num_cores = _tpu_generation_info()

    # ---- lane layout -------------------------------------------------------
    if D < 128 and 128 % D == 0 and (T * D) % 128 == 0:
        # Fold g consecutive timesteps into one 128-lane row (free reshape of
        # contiguous HBM data) -> lane-dense loads/stores for small D.
        group = 128 // D
        lanes = 128
        rows = (T * D) // 128
        d_pad = 0
        x_k = x.reshape(B, rows, lanes)
    else:
        group = 1
        d_pad = (-D) % 128
        if d_pad and d_pad * 8 > D:  # padding too expensive -> keep full-D blocks
            d_pad = 0
        lanes = D + d_pad
        rows = T
        x_k = jnp.pad(x, ((0, 0), (0, 0), (0, d_pad))) if d_pad else x

    # ---- weights: (out,in) -> (in,out); block-replicate/scale for folding ---
    def prep_w(name):
        w = jnp.asarray(params[name], jnp.float32).T         # x @ w layout
        if group > 1:
            # Replicated-lane matmul: LHS lane j carries feature j % D, so
            # tile(W,(g,g))/g makes (Bb,128)@(128,128) return the per-feature
            # result replicated across lane groups (no in-kernel tiling/slicing).
            w = jnp.tile(w, (group, group)) / group
        elif d_pad:
            w = jnp.pad(w, ((0, d_pad), (0, d_pad)))
        return w

    weights = []
    if mode != "avg":
        weights.append(prep_w("mean_w"))
    if mode in ("adaptive_scale", "full"):
        weights.append(prep_w("scale_w"))
    if mode == "full":
        weights.append(prep_w("gate_w"))
        bg = jnp.asarray(params["gate_b"], jnp.float32).reshape(1, D)
        if group > 1:
            bg = jnp.tile(bg, (1, group))
        elif d_pad:
            bg = jnp.pad(bg, ((0, 0), (0, d_pad)))
        weights.append(bg)

    # ---- batch tiling (megacore-aware, awkward B handled by padding) --------
    bb, steps, b_pad = _plan_batch_tiling(
        B, rows, lanes, x_k.dtype.itemsize,
        num_cores=num_cores, vmem_budget=vmem_budget)
    if b_pad:
        x_k = jnp.pad(x_k, ((0, b_pad), (0, 0), (0, 0)))     # garbage rows sliced off

    out_k = _dain_pallas_call(x_k, weights, mode, bb, steps,
                              feat=D, group=group, vmem_budget=vmem_budget)

    if b_pad:
        out_k = out_k[:B]
    if group > 1:
        return out_k.reshape(B, T, D)
    return out_k[..., :D] if d_pad else out_k


# --------------------------------------------------------------------------- #
# Pure-JAX reference (mirrors the PyTorch forward exactly, two-pass)
# --------------------------------------------------------------------------- #
def dain_reference(x, params, mode="adaptive_avg"):
    if mode is None:
        return x
    wm = jnp.asarray(params["mean_w"])
    ws = jnp.asarray(params["scale_w"])
    wg = jnp.asarray(params["gate_w"])
    bg = jnp.asarray(params["gate_b"])

    avg = jnp.mean(x, axis=1)                                # (B, D)
    if mode == "avg":
        return x - avg[:, None, :]
    adaptive_avg = avg @ wm.T
    x = x - adaptive_avg[:, None, :]
    if mode == "adaptive_avg":
        return x
    std = jnp.sqrt(jnp.mean(x ** 2, axis=1) + EPS)
    adaptive_std = std @ ws.T
    adaptive_std = jnp.where(adaptive_std <= EPS, 1.0, adaptive_std)
    x = x / adaptive_std[:, None, :]
    if mode == "adaptive_scale":
        return x
    avg2 = jnp.mean(x, axis=1)
    gate = jax.nn.sigmoid(avg2 @ wg.T + bg)
    return x * gate[:, None, :]


def init_params(input_dim, key):
    """Deterministic parameter init matching the module's __init__."""
    mean_w = jnp.eye(input_dim, dtype=jnp.float32)           # identity, bias=False
    scale_w = jnp.eye(input_dim, dtype=jnp.float32)          # identity, bias=False
    kw, kb = jax.random.split(key)
    bound = 1.0 / np.sqrt(input_dim)                         # default nn.Linear init
    gate_w = jax.random.uniform(kw, (input_dim, input_dim), jnp.float32,
                                -bound, bound)
    gate_b = jax.random.uniform(kb, (input_dim,), jnp.float32, -bound, bound)
    return {"mean_w": mean_w, "scale_w": scale_w,
            "gate_w": gate_w, "gate_b": gate_b}


# --------------------------------------------------------------------------- #
# Test
# --------------------------------------------------------------------------- #
if __name__ == "__main__":
    key = jax.random.PRNGKey(0)
    ok = True
    # (4, 8, 32)  : lane-folded path (D | 128), even batch.
    # (3, 8, 144) : flat path (module's default input_dim), odd batch -> B padding.
    for (B, T, D) in ((4, 8, 32), (3, 8, 144)):
        kx, kp, key = jax.random.split(key, 3)
        x = jax.random.normal(kx, (B, T, D), dtype=jnp.float32)
        params = init_params(D, kp)
        for mode in (None, "avg", "adaptive_avg", "adaptive_scale", "full"):
            out = jax.block_until_ready(dain_forward(x, params, mode=mode))
            ref = dain_reference(x, params, mode=mode)
            if not np.allclose(np.asarray(out), np.asarray(ref),
                               rtol=1e-5, atol=1e-5):
                ok = False
                err = np.max(np.abs(np.asarray(out) - np.asarray(ref)))
                print(f"MISMATCH B={B} T={T} D={D} mode={mode}: max abs err {err}")

    if ok:
        print("KERNEL_OK")
</pallas_src>

<mosaic_0001>
module attributes {stable_mosaic.version = 11 : i64} {
  func.func @_dain_kernel(%arg0: i32, %arg1: memref<2x2x128xf32, #tpu.memory_space<vmem>>, %arg2: memref<2x2x128xf32, #tpu.memory_space<vmem>>) attributes {dimension_semantics = [#tpu.dimension_semantics<parallel>], iteration_bounds = array<i64: 2>, scalar_prefetch = 0 : i64, scratch_operands = 0 : i64, tpu.core_type = #tpu.core_type<tc>, window_params = [{transform_indices = @transform_0, window_bounds = array<i64: 2, 2, 128>}, {transform_indices = @transform_1, window_bounds = array<i64: 2, 2, 128>}]} {
    %c0 = arith.constant 0 : index
    %c0_0 = arith.constant 0 : index
    %c0_1 = arith.constant 0 : index
    %0 = vector.load %arg1[%c0, %c0_0, %c0_1] : memref<2x2x128xf32, #tpu.memory_space<vmem>>, vector<2x2x128xf32>
    %cst = arith.constant dense<0.000000e+00> : vector<2x128xf32>
    %1 = vector.multi_reduction <add>, %0, %cst [1] : vector<2x2x128xf32> to vector<2x128xf32>
    %c32_i32 = arith.constant 32 : i32
    %2 = tpu.dynamic_rotate %1 by %c32_i32 dim 1 : vector<2x128xf32>, i32 -> vector<2x128xf32>
    %3 = arith.addf %1, %2 : vector<2x128xf32>
    %c64_i32 = arith.constant 64 : i32
    %4 = tpu.dynamic_rotate %3 by %c64_i32 dim 1 : vector<2x128xf32>, i32 -> vector<2x128xf32>
    %5 = arith.addf %3, %4 : vector<2x128xf32>
    %cst_2 = arith.constant 1.250000e-01 : f32
    %6 = vector.broadcast %cst_2 : f32 to vector<2x128xf32>
    %7 = arith.mulf %5, %6 : vector<2x128xf32>
    %8 = vector.shape_cast %7 : vector<2x128xf32> to vector<2x1x128xf32>
    %9 = vector.broadcast %8 : vector<2x1x128xf32> to vector<2x2x128xf32>
    %10 = arith.subf %0, %9 : vector<2x2x128xf32>
    %c0_3 = arith.constant 0 : index
    %c0_4 = arith.constant 0 : index
    %c0_5 = arith.constant 0 : index
    %11 = vector.load %arg2[%c0_3, %c0_4, %c0_5] : memref<2x2x128xf32, #tpu.memory_space<vmem>>, vector<2x2x128xf32>
    tpu.vector_store %arg2[%c0_3, %c0_4, %c0_5], %10 {strides = array<i32>} : memref<2x2x128xf32, #tpu.memory_space<vmem>>, vector<2x2x128xf32>,
    return
  }
  func.func @transform_0(%arg0: i32) -> (i32, i32, i32) {
    %c0_i32 = arith.constant 0 : i32
    %c0_i32_0 = arith.constant 0 : i32
    %c0_i32_1 = arith.constant 0 : i32
    return %arg0, %c0_i32, %c0_i32_0 : i32, i32, i32
  }
  func.func @transform_1(%arg0: i32) -> (i32, i32, i32) {
    %c0_i32 = arith.constant 0 : i32
    %c0_i32_0 = arith.constant 0 : i32
    %c0_i32_1 = arith.constant 0 : i32
    return %arg0, %c0_i32, %c0_i32_0 : i32, i32, i32
  }
}

</mosaic_0001>

<llo_original>
// kernel: tpu_custom_call.1
$region0: #{tpu_custom_call.1}
  #allocation0 [shape = 'u32[]', space=smem, size = 0x4, offset = 0x4, fixed_abs, tag = 'smem constant byte address 0x4 - core index']
  #allocation1 [shape = 'u32[144,128]{1,0:T(1,128)}', space=vmem, size = 0x12000, scoped, tag = 'internal scratch']
  %s0 = inlined_call_operand.hbm [shape: f32[4,2,128], index: 0, kind: input, shape index: {}]
  %s1 = inlined_call_operand.hbm [shape: f32[4,2,128], index: 1, kind: output, shape index: {}]
  %s2 = sld [smem:[#allocation0]]
  $region41: #{tpu_custom_call.1} parent=0
    _
  %s4 = ssub.s32 1, %s2
  %s5 = scalar_select 0, %s4, %s2
  $region1: #{tpu_custom_call.1} parent=0
    #allocation2 [shape = 'u8[4096]{0}', space=vmem, size = 0x1000, scoped, tag = 'input window, operand 0']
    #allocation3 [shape = 's32[2]{0}', space=sflag, size = 0x8, scoped, tag = 'scoped memory for tpu_custom_call.1']
    #allocation4 [shape = 's32[2]{0}', space=sflag, size = 0x8, scoped, tag = 'scoped memory for tpu_custom_call.1']
    #allocation5 [shape = 'u8[4096]{0}', space=vmem, size = 0x1000, scoped, tag = 'output window, operand 0']
    %6 = vsyncpa [#allocation3], 0
    %s7 = scalar_lea.sflag [#allocation3], 1
    %8 = vsyncpa %s7, 0
    %9 = vsyncpa [#allocation4], 0
    %s10 = scalar_lea.sflag [#allocation4], 1
    %11 = vsyncpa %s10, 0
    loop: start=0, step=1, limit=4
    $region2: #{tpu_custom_call.1} parent=1 // loop_pre_header
      _
    $region3: #{tpu_custom_call.1} parent=1 // loop_header
      %s13 = sphi 0, %s17
      %p14 = scmp.ge.s32.totalorder %s13, 4
      %s23 = sphi 0, %s25
      %s26 = sphi 0, %s23
      %s27 = sphi 0, %s26
      %s43 = sphi 0, %s27
      %s49 = sphi 0, %s51
      %s52 = sphi 0, %s49
      %s53 = sphi 0, %s52
      %s69 = sphi 0, %s53
    $region4: #{tpu_custom_call.1} parent=1 // loop_header_branch
      %16 = sbr.rel (%p14) target = $region8
    $region5: #{tpu_custom_call.1} parent=1 // loop_body
      %s18 = ssub.s32 %s13, 1
      %s19 = ssub.s32 %s13, 2
      %s20 = sadd.s32 %s13, 1
      %s21 = ssub.s32 %s13, %s20
      %p22 = scmp.eq.s32.totalorder %s21, 0
      %s24 = sadd.s32 %s23, 1
      %s25 = scalar_select %p22, %s23, %s24
      %p28 = pneg %p22
      %p29 = scmp.eq.s32.totalorder %s13, 1
      %p30 = por %p28, %p29
      %p31 = scmp.ne.s32.totalorder %s23, %s26
      %p32 = scmp.eq.s32.totalorder %s13, 0
      %p33 = por %p31, %p32
      %p34 = scmp.ne.s32.totalorder %s23, %s26
      %p35 = scmp.eq.s32.totalorder %s18, 1
      %p36 = por %p34, %p35
      %p37 = scmp.ne.s32.totalorder %s26, %s27
      %p38 = scmp.eq.s32.totalorder %s18, 0
      %p39 = por %p37, %p38
      %p40 = scmp.ne.s32.totalorder %s26, %s27
      %p41 = scmp.eq.s32.totalorder %s19, 1
      %p42 = por %p40, %p41
      %p44 = scmp.ne.s32.totalorder %s27, %s43
      %p45 = scmp.eq.s32.totalorder %s19, 0
      %p46 = por %p44, %p45
      %s47 = ssub.s32 %s13, %s20
      %p48 = scmp.eq.s32.totalorder %s47, 0
      %s50 = sadd.s32 %s49, 1
      %s51 = scalar_select %p48, %s49, %s50
      %p54 = pneg %p48
      %p55 = scmp.eq.s32.totalorder %s13, 1
      %p56 = por %p54, %p55
      %p57 = scmp.ne.s32.totalorder %s49, %s52
      %p58 = scmp.eq.s32.totalorder %s13, 0
      %p59 = por %p57, %p58
      %p60 = scmp.ne.s32.totalorder %s49, %s52
      %p61 = scmp.eq.s32.totalorder %s18, 1
      %p62 = por %p60, %p61
      %p63 = scmp.ne.s32.totalorder %s52, %s53
      %p64 = scmp.eq.s32.totalorder %s18, 0
      %p65 = por %p63, %p64
      %p66 = scmp.ne.s32.totalorder %s52, %s53
      %p67 = scmp.eq.s32.totalorder %s19, 1
      %p68 = por %p66, %p67
      %p70 = scmp.ne.s32.totalorder %s53, %s69
      %p71 = scmp.eq.s32.totalorder %s19, 0
      %p72 = por %p70, %p71
      %p73 = scmp.le.s32.totalorder 1, %s13
      %p74 = scmp.lt.s32.totalorder %s13, 3
      %p75 = pnand %p73, %p74
      %p76 = pneg %p75
      // Predicated region
      $region9: #{tpu_custom_call.1} parent=5 // pred_check
        _
      $region10: #{tpu_custom_call.1} parent=5 // pred_check_branch
        %78 = sbr.rel (%p75) target = $region12
      $region11: #{tpu_custom_call.1} parent=5 // pred_region
        %s79 = ssub.s32 %s13, 1
      $region12: #{tpu_custom_call.1} parent=5 // pred_fallthru
        _
      %p80 = scmp.lt.s32.totalorder %s13, 2
      // Predicated region
      $region13: #{tpu_custom_call.1} parent=5 // pred_check
        %p81 = pneg %p80
      $region14: #{tpu_custom_call.1} parent=5 // pred_check_branch
        %83 = sbr.rel (%p81) target = $region16
      $region15: #{tpu_custom_call.1} parent=5 // pred_region
        // Predicated region
        $region17: #{tpu_custom_call.1} parent=15 // pred_check
          %p84 = pneg %p33
        $region18: #{tpu_custom_call.1} parent=15 // pred_check_branch
          %86 = sbr.rel (%p84) target = $region20
        $region19: #{tpu_custom_call.1} parent=15 // pred_region
          %s87 = sand.u32 %s23, 1
          %s88 = scalar_lea.sflag [#allocation3], %s87
          %s89 = sand.u32 %s23, 1
          %s90 = smul.addr %s89, 4
          %s91 = scalar_lea.vmem [#allocation2], %s90
          %s92 = smul.u32 2, %s13
          %s94 = ssub.s32 64, 64
          %95 = vsyncadd %s88, %s94
          %s96 = smul.addr %s92, 32
          %s97 = scalar_lea.hbm %s0, %s96
          %s98 = sshll.u32 %s91, 4
          %s99 = int_to_ptr.vmem [resolvable:$true] %s98
          %104 = dma.hbm_to_vmem [thread:$0]  %s97, 64, %s99, %s88, 32, 32, 2
        $region20: #{tpu_custom_call.1} parent=15 // pred_fallthru
          _
      $region16: #{tpu_custom_call.1} parent=5 // pred_fallthru
        _
      %p105 = scmp.le.s32.totalorder 1, %s13
      %p106 = scmp.lt.s32.totalorder %s13, 3
      %p107 = pnand %p105, %p106
      %p108 = pneg %p107
      // Predicated region
      $region21: #{tpu_custom_call.1} parent=5 // pred_check
        _
      $region22: #{tpu_custom_call.1} parent=5 // pred_check_branch
        %110 = sbr.rel (%p107) target = $region24
      $region23: #{tpu_custom_call.1} parent=5 // pred_region
        %s111 = ssub.s32 %s13, 1
        %s112 = sand.u32 %s26, 1
        %s113 = scalar_lea.sflag [#allocation3], %s112
        %s114 = sand.u32 %s26, 1
        %s115 = smul.addr %s114, 4
        %s116 = scalar_lea.vmem [#allocation2], %s115
        // Predicated region
        $region25: #{tpu_custom_call.1} parent=23 // pred_check
          %p117 = pneg %p39
        $region26: #{tpu_custom_call.1} parent=23 // pred_check_branch
          %119 = sbr.rel (%p117) target = $region28
        $region27: #{tpu_custom_call.1} parent=23 // pred_region
          %120 = dma.done %s113, 64
        $region28: #{tpu_custom_call.1} parent=23 // pred_fallthru
          _
        %s121 = sand.u32 %s26, 1
        %s122 = scalar_lea.sflag [#allocation3], %s121
        %s123 = sand.u32 %s26, 1
        %s124 = smul.addr %s123, 4
        %s125 = scalar_lea.vmem [#allocation2], %s124
        %p126 = pneg %p39
        %p127 = pneg %p36
        %p128 = pneg %p65
        %p129 = pneg %p62
        %s130 = sand.u32 %s52, 1
        %s131 = scalar_lea.sflag [#allocation4], %s130
        %s132 = sand.u32 %s52, 1
        %s133 = smul.addr %s132, 4
        %s134 = scalar_lea.vmem [#allocation5], %s133
        %s135 = smul.u32 2, %s18
        %s136 = smul.u32 2, %s18
        %v137 = vld [vmem:[%s116] sm:$0x3]
        %v138 = vld [vmem:[%s116 + $0x2] sm:$0x3]
        %vm139 = vcmask 1041408
        %v140 = vsel %vm139, %v137, 0.0
        %v141 = vrot.slane %v140, 4
        %v142 = vadd.f32 %v140, %v141
        %v143 = vrot.slane %v142, 2
        %v144 = vadd.f32 %v142, %v143
        %v145 = vrot.slane %v144, 1
        %v146 = vadd.f32 %v144, %v145
        %v147 = vsel %vm139, %v138, 0.0
        %v148 = vrot.slane %v147, 4
        %v149 = vadd.f32 %v147, %v148
        %v150 = vrot.slane %v149, 2
        %v151 = vadd.f32 %v149, %v150
        %v152 = vrot.slane %v151, 1
        %v153 = vadd.f32 %v151, %v152
        %vm156 = vcmask 1041409
        %v157 = vsel %vm156, %v153, %v146
        %159 = vrot.lane.b32.xlu0 %v157, 32
        %v160 = vpop.permute.xlu0 %159
        %v162 = vrot.slane %v160, 1
        %v165 = vadd.f32 %v146, %v160
        %v166 = vadd.f32 %v153, %v162
        %v169 = vrot.slane %v166, 7
        %v170 = vsel %vm156, %v169, %v165
        %172 = vrot.lane.b32.xlu0 %v170, 64
        %v173 = vpop.permute.xlu0 %172
        %v175 = vrot.slane %v173, 1
        %v178 = vadd.f32 %v165, %v173
        %v179 = vadd.f32 %v166, %v175
        %v180 = vmul.f32 %v178, 0.125
        %v181 = vmul.f32 %v179, 0.125
        %v182 = vlaneseq
        %v183 = vshrl.u32 %v182, 7
        %v184 = vsub.s32 0, %v183
        %v185 = vrot.slane %v180, %v184
        %v186 = vlaneseq
        %v187 = vshrl.u32 %v186, 7
        %v188 = vsub.s32 0, %v187
        %v189 = vrot.slane %v181, %v188
        %v190 = vsub.f32 %v137, %v185
        %v191 = vsub.f32 %v138, %v189
        %192 = vst [vmem:[%s134] sm:$0x3] %v190
        %193 = vst [vmem:[%s134 + $0x2] sm:$0x3] %v191
        %s194 = sand.u32 %s52, 1
        %s195 = scalar_lea.sflag [#allocation4], %s194
        %s196 = sand.u32 %s52, 1
        %s197 = smul.addr %s196, 4
        %s198 = scalar_lea.vmem [#allocation5], %s197
        // Predicated region
        $region29: #{tpu_custom_call.1} parent=23 // pred_check
          %p199 = pneg %p62
        $region30: #{tpu_custom_call.1} parent=23 // pred_check_branch
          %201 = sbr.rel (%p199) target = $region32
        $region31: #{tpu_custom_call.1} parent=23 // pred_region
          %s202 = smul.u32 2, %s18
          %s204 = ssub.s32 64, 64
          %205 = vsyncadd %s195, %s204
          %s206 = smul.addr %s202, 32
          %s207 = scalar_lea.hbm %s1, %s206
          %s208 = sshll.u32 %s198, 4
          %s209 = int_to_ptr.vmem [resolvable:$true] %s208
          %214 = dma.vmem_to_hbm [thread:$0]  %s209, 64, %s207, %s195, 32, 32, 2
        $region32: #{tpu_custom_call.1} parent=23 // pred_fallthru
          _
      $region24: #{tpu_custom_call.1} parent=5 // pred_fallthru
        _
      %p215 = scmp.le.s32.totalorder 2, %s13
      // Predicated region
      $region33: #{tpu_custom_call.1} parent=5 // pred_check
        %p216 = pneg %p215
      $region34: #{tpu_custom_call.1} parent=5 // pred_check_branch
        %218 = sbr.rel (%p216) target = $region36
      $region35: #{tpu_custom_call.1} parent=5 // pred_region
        %s219 = ssub.s32 %s13, 2
        // Predicated region
        $region37: #{tpu_custom_call.1} parent=35 // pred_check
          %p220 = pneg %p68
        $region38: #{tpu_custom_call.1} parent=35 // pred_check_branch
          %222 = sbr.rel (%p220) target = $region40
        $region39: #{tpu_custom_call.1} parent=35 // pred_region
          %s223 = sand.u32 %s53, 1
          %s224 = scalar_lea.sflag [#allocation4], %s223
          %s225 = sand.u32 %s53, 1
          %s226 = smul.addr %s225, 4
          %s227 = scalar_lea.vmem [#allocation5], %s226
          %228 = dma.done %s224, 64
        $region40: #{tpu_custom_call.1} parent=35 // pred_fallthru
          _
      $region36: #{tpu_custom_call.1} parent=5 // pred_fallthru
        _
    $region6: #{tpu_custom_call.1} parent=1 // loop_footer
      %s17 = sadd.s32 1, %s13
    $region7: #{tpu_custom_call.1} parent=1 // loop_footer_branch
      %12 = sbr.rel target = $region3
    $region8: #{tpu_custom_call.1} parent=1 // loop_exit
      _
    %229 = vsyncpa [#allocation3], 1
    %s230 = scalar_lea.sflag [#allocation3], 1
    %231 = vsyncpa %s230, 1
    %232 = vsyncpa [#allocation4], 1
    %s233 = scalar_lea.sflag [#allocation4], 1
    %234 = vsyncpa %s233, 1

</llo_original>
